<compile_context>
chip_gen: v5e
topology: v5e:2x2
jax: 0.10.0
libtpu: 0.0.40
codegen_flags: <defaults>
</compile_context>

<pallas_src>
import jax
import jax.numpy as jnp
from jax.experimental import pallas as pl
from jax.experimental.pallas import tpu as pltpu


def _han_gan_encoder_kernel(x0_ref, x1_ref, w_ref, b_ref, out_ref):
    # x0_ref, x1_ref: (TB, K)  bf16 flattened document tiles (K = S*D)
    # w_ref:          (K, E)   bf16 pool-folded weights  (= tile(w / S, (S, 1)))
    # b_ref:          (1, E)   f32 bias
    # out_ref:        (TB, 4E) f32
    e_dim = b_ref.shape[1]
    w = w_ref[...]
    b = b_ref[...]

    # Two straight MXU dots (no concatenate / no sublane split), f32 accumulation.
    e0 = jnp.dot(x0_ref[...], w, preferred_element_type=jnp.float32) + b
    e1 = jnp.dot(x1_ref[...], w, preferred_element_type=jnp.float32) + b

    # cont = cat([e0, e1, |e0-e1|, e0*e1], dim=1) as four lane-aligned direct stores.
    out_ref[:, 0:e_dim] = e0
    out_ref[:, e_dim:2 * e_dim] = e1
    out_ref[:, 2 * e_dim:3 * e_dim] = jnp.abs(e0 - e1)
    out_ref[:, 3 * e_dim:4 * e_dim] = e0 * e1


def prepare_doc_encoder_params(w, b, S):
    """Hoisted, call-once parameter prep: fold the mean-pool into the weight."""
    D, E = w.shape
    w_pool = jnp.tile(w.astype(jnp.float32) / jnp.float32(S), (S, 1))  # (S*D, E)
    w_pool = w_pool.astype(jnp.bfloat16)
    b2 = b.reshape(1, E).astype(jnp.float32)
    return w_pool, b2


def _pick_tb(B, target=512):
    """Largest divisor of B that is <= target, bf16-sublane friendly (mult of 16 or == B),
    preferring >= 2 grid steps so both v7x TensorCores get work."""
    divs = [d for d in range(1, B + 1) if B % d == 0 and d <= target]
    friendly = [d for d in divs if d % 16 == 0 or d == B] or divs
    two_step = [d for d in friendly if B // d >= 2] or friendly
    return max(two_step)


def _vmem_limit_bytes(tb, K, E):
    # inputs (bf16, 2 arrays, double-buffered) + output (f32, double-buffered)
    # + weight/bias (constant index map, still 2 buffers each by default).
    est = (2 * tb * K * 2 * 2) + (tb * 4 * E * 4 * 2) + (K * E * 2 * 2) + (E * 4 * 2)
    return int(min(max(2 * est, 16 << 20), 32 << 20))


def han_gan_encoder(x0, x1, w_pool, b2, *, tb=None):
    """x0, x1: (B, S, D); w_pool: (S*D, E) bf16; b2: (1, E) f32 -> (B, 4E) f32."""
    B, S, D = x0.shape
    K, E = w_pool.shape
    assert K == S * D

    # Lane-dense flattening (free: last-dim contiguous) + bf16 MXU feed.
    x0f = x0.reshape(B, K).astype(jnp.bfloat16)
    x1f = x1.reshape(B, K).astype(jnp.bfloat16)

    if tb is None:
        tb = _pick_tb(B)
    assert B % tb == 0, "batch must be divisible by the batch tile"
    grid = (B // tb,)

    return pl.pallas_call(
        _han_gan_encoder_kernel,
        out_shape=jax.ShapeDtypeStruct((B, 4 * E), jnp.float32),
        grid_spec=pltpu.PrefetchScalarGridSpec(
            num_scalar_prefetch=0,
            grid=grid,
            in_specs=[
                pl.BlockSpec((tb, K), lambda i: (i, 0)),   # x0 tile (bf16)
                pl.BlockSpec((tb, K), lambda i: (i, 0)),   # x1 tile (bf16)
                pl.BlockSpec((K, E), lambda i: (0, 0)),    # w_pool (VMEM-resident)
                pl.BlockSpec((1, E), lambda i: (0, 0)),    # bias   (VMEM-resident)
            ],
            out_specs=pl.BlockSpec((tb, 4 * E), lambda i: (i, 0)),
        ),
        compiler_params=pltpu.CompilerParams(
            dimension_semantics=("parallel",),          # batch axis -> both TCs on v7x
            vmem_limit_bytes=_vmem_limit_bytes(tb, K, E),
        ),
    )(x0f, x1f, w_pool, b2)


def reference(x0, x1, w, b):
    e0 = jnp.mean(x0, axis=1) @ w + b
    e1 = jnp.mean(x1, axis=1) @ w + b
    return jnp.concatenate([e0, e1, jnp.abs(e0 - e1), e0 * e1], axis=-1)


if __name__ == "__main__":
    # Small shapes consistent with the module: batch=32 doc pairs, 8 tokens,
    # token_dim=32, encoder_dim=128 -> output (32, 512); grid=(2,) so both
    # v7x TensorCores are exercised.
    B, S, D, E = 32, 8, 32, 128

    key = jax.random.PRNGKey(0)
    k_x0, k_x1, k_w, k_b = jax.random.split(key, 4)

    x0 = jax.random.normal(k_x0, (B, S, D), dtype=jnp.float32)
    x1 = jax.random.normal(k_x1, (B, S, D), dtype=jnp.float32)

    # Deterministic "doc_encoder" parameters (synthetic, not a checkpoint).
    w = jax.random.normal(k_w, (D, E), dtype=jnp.float32) * (1.0 / jnp.sqrt(D))
    b = jax.random.normal(k_b, (E,), dtype=jnp.float32) * 0.01

    # Parameter prep happens once, outside the per-call path.
    w_pool, b2 = prepare_doc_encoder_params(w, b, S)

    out = han_gan_encoder(x0, x1, w_pool, b2)
    out = jax.block_until_ready(out)

    ref = reference(x0, x1, w, b)
    assert out.shape == (B, 4 * E), out.shape
    # bf16 MXU inputs -> loosened tolerance vs. the f32 reference.
    assert jnp.allclose(out, ref, atol=3e-2, rtol=3e-2), "mismatch vs reference"

    print("KERNEL_OK")
</pallas_src>

<mosaic_0001>
module attributes {stable_mosaic.version = 11 : i64} {
  func.func @_han_gan_encoder_kernel(%arg0: i32, %arg1: memref<16x256xbf16, #tpu.memory_space<vmem>>, %arg2: memref<16x256xbf16, #tpu.memory_space<vmem>>, %arg3: memref<256x128xbf16, #tpu.memory_space<vmem>>, %arg4: memref<1x128xf32, #tpu.memory_space<vmem>>, %arg5: memref<16x512xf32, #tpu.memory_space<vmem>>) attributes {dimension_semantics = [#tpu.dimension_semantics<parallel>], iteration_bounds = array<i64: 2>, scalar_prefetch = 0 : i64, scratch_operands = 0 : i64, tpu.core_type = #tpu.core_type<tc>, window_params = [{transform_indices = @transform_0, window_bounds = array<i64: 16, 256>}, {transform_indices = @transform_1, window_bounds = array<i64: 16, 256>}, {pipeline_mode = #tpu.pipeline_mode<synchronous>, transform_indices = @transform_2, window_bounds = array<i64: 256, 128>}, {pipeline_mode = #tpu.pipeline_mode<synchronous>, transform_indices = @transform_3, window_bounds = array<i64: 1, 128>}, {transform_indices = @transform_4, window_bounds = array<i64: 16, 512>}]} {
    %c0 = arith.constant 0 : index
    %c0_0 = arith.constant 0 : index
    %0 = vector.load %arg3[%c0, %c0_0] : memref<256x128xbf16, #tpu.memory_space<vmem>>, vector<256x128xbf16>
    %c0_1 = arith.constant 0 : index
    %c0_2 = arith.constant 0 : index
    %1 = vector.load %arg4[%c0_1, %c0_2] : memref<1x128xf32, #tpu.memory_space<vmem>>, vector<1x128xf32>
    %c0_3 = arith.constant 0 : index
    %c0_4 = arith.constant 0 : index
    %2 = vector.load %arg1[%c0_3, %c0_4] : memref<16x256xbf16, #tpu.memory_space<vmem>>, vector<16x256xbf16>
    %cst = arith.constant dense<0.000000e+00> : vector<16x128xf32>
    %3 = tpu.matmul %2, %0, %cst {dimension_numbers = #tpu.dot_dimension_numbers<[1], [0], [0], [1], [0, 0, 1, 1], [], []>} : vector<16x256xbf16>, vector<256x128xbf16>, vector<16x128xf32> -> vector<16x128xf32>
    %4 = vector.broadcast %1 : vector<1x128xf32> to vector<16x128xf32>
    %5 = arith.addf %3, %4 : vector<16x128xf32>
    %c0_5 = arith.constant 0 : index
    %c0_6 = arith.constant 0 : index
    %6 = vector.load %arg2[%c0_5, %c0_6] : memref<16x256xbf16, #tpu.memory_space<vmem>>, vector<16x256xbf16>
    %cst_7 = arith.constant dense<0.000000e+00> : vector<16x128xf32>
    %7 = tpu.matmul %6, %0, %cst_7 {dimension_numbers = #tpu.dot_dimension_numbers<[1], [0], [0], [1], [0, 0, 1, 1], [], []>} : vector<16x256xbf16>, vector<256x128xbf16>, vector<16x128xf32> -> vector<16x128xf32>
    %8 = vector.broadcast %1 : vector<1x128xf32> to vector<16x128xf32>
    %9 = arith.addf %7, %8 : vector<16x128xf32>
    %c0_8 = arith.constant 0 : index
    %c0_9 = arith.constant 0 : index
    %10 = vector.load %arg5[%c0_8, %c0_9] : memref<16x512xf32, #tpu.memory_space<vmem>>, vector<16x128xf32>
    tpu.vector_store %arg5[%c0_8, %c0_9], %5 {strides = array<i32>} : memref<16x512xf32, #tpu.memory_space<vmem>>, vector<16x128xf32>,
    %c0_10 = arith.constant 0 : index
    %c128 = arith.constant 128 : index
    %11 = vector.load %arg5[%c0_10, %c128] : memref<16x512xf32, #tpu.memory_space<vmem>>, vector<16x128xf32>
    tpu.vector_store %arg5[%c0_10, %c128], %9 {strides = array<i32>} : memref<16x512xf32, #tpu.memory_space<vmem>>, vector<16x128xf32>,
    %12 = arith.subf %5, %9 : vector<16x128xf32>
    %13 = math.absf %12 : vector<16x128xf32>
    %c0_11 = arith.constant 0 : index
    %c256 = arith.constant 256 : index
    %14 = vector.load %arg5[%c0_11, %c256] : memref<16x512xf32, #tpu.memory_space<vmem>>, vector<16x128xf32>
    tpu.vector_store %arg5[%c0_11, %c256], %13 {strides = array<i32>} : memref<16x512xf32, #tpu.memory_space<vmem>>, vector<16x128xf32>,
    %15 = arith.mulf %5, %9 : vector<16x128xf32>
    %c0_12 = arith.constant 0 : index
    %c384 = arith.constant 384 : index
    %16 = vector.load %arg5[%c0_12, %c384] : memref<16x512xf32, #tpu.memory_space<vmem>>, vector<16x128xf32>
    tpu.vector_store %arg5[%c0_12, %c384], %15 {strides = array<i32>} : memref<16x512xf32, #tpu.memory_space<vmem>>, vector<16x128xf32>,
    return
  }
  func.func @transform_0(%arg0: i32) -> (i32, i32) {
    %c0_i32 = arith.constant 0 : i32
    %c0_i32_0 = arith.constant 0 : i32
    return %arg0, %c0_i32 : i32, i32
  }
  func.func @transform_1(%arg0: i32) -> (i32, i32) {
    %c0_i32 = arith.constant 0 : i32
    %c0_i32_0 = arith.constant 0 : i32
    return %arg0, %c0_i32 : i32, i32
  }
  func.func @transform_2(%arg0: i32) -> (i32, i32) {
    %c0_i32 = arith.constant 0 : i32
    %c0_i32_0 = arith.constant 0 : i32
    %c0_i32_1 = arith.constant 0 : i32
    return %c0_i32, %c0_i32_0 : i32, i32
  }
  func.func @transform_3(%arg0: i32) -> (i32, i32) {
    %c0_i32 = arith.constant 0 : i32
    %c0_i32_0 = arith.constant 0 : i32
    %c0_i32_1 = arith.constant 0 : i32
    return %c0_i32, %c0_i32_0 : i32, i32
  }
  func.func @transform_4(%arg0: i32) -> (i32, i32) {
    %c0_i32 = arith.constant 0 : i32
    %c0_i32_0 = arith.constant 0 : i32
    return %arg0, %c0_i32 : i32, i32
  }
}

</mosaic_0001>

<llo_original>
// kernel: tpu_custom_call.1
$region0: #{tpu_custom_call.1}
  #allocation0 [shape = 'u32[]', space=smem, size = 0x4, offset = 0x4, fixed_abs, tag = 'smem constant byte address 0x4 - core index']
  #allocation1 [shape = 'u32[72,128]{1,0:T(1,128)}', space=vmem, size = 0x9000, scoped, tag = 'internal scratch']
  %s0 = inlined_call_operand.hbm [shape: bf16[32,256], index: 0, kind: input, shape index: {}]
  %s1 = inlined_call_operand.hbm [shape: bf16[32,256], index: 1, kind: input, shape index: {}]
  %s2 = inlined_call_operand.hbm [shape: bf16[256,128], index: 2, kind: input, shape index: {}]
  %s3 = inlined_call_operand.vmem [shape: f32[1,128], index: 3, kind: input, shape index: {}]
  %s4 = inlined_call_operand.hbm [shape: f32[32,512], index: 4, kind: output, shape index: {}]
  %s5 = sld [smem:[#allocation0]]
  $region61: #{tpu_custom_call.1} parent=0
    _
  %s7 = ssub.s32 1, %s5
  %s8 = scalar_select 0, %s7, %s5
  $region1: #{tpu_custom_call.1} parent=0
    #allocation2 [shape = 'u8[16384]{0}', space=vmem, size = 0x4000, scoped, tag = 'input window, operand 0']
    #allocation3 [shape = 's32[2]{0}', space=sflag, size = 0x8, scoped, tag = 'scoped memory for tpu_custom_call.1']
    #allocation4 [shape = 's32[2]{0}', space=sflag, size = 0x8, scoped, tag = 'scoped memory for tpu_custom_call.1']
    #allocation5 [shape = 'u8[16384]{0}', space=vmem, size = 0x4000, scoped, tag = 'input window, operand 1']
    #allocation6 [shape = 's32[2]{0}', space=sflag, size = 0x8, scoped, tag = 'scoped memory for tpu_custom_call.1']
    #allocation7 [shape = 'u8[65536]{0}', space=vmem, size = 0x10000, scoped, tag = 'input window, operand 2, single buffered']
    #allocation8 [shape = 'u8[65536]{0}', space=vmem, size = 0x10000, scoped, tag = 'output window, operand 0']
    %9 = vsyncpa [#allocation3], 0
    %s10 = scalar_lea.sflag [#allocation3], 1
    %11 = vsyncpa %s10, 0
    %12 = vsyncpa [#allocation6], 0
    %s13 = scalar_lea.sflag [#allocation6], 1
    %14 = vsyncpa %s13, 0
    %15 = vsyncpa [#allocation4], 0
    %s16 = scalar_lea.sflag [#allocation4], 1
    %17 = vsyncpa %s16, 0
    loop: start=0, step=1, limit=4
    $region2: #{tpu_custom_call.1} parent=1 // loop_pre_header
      _
    $region3: #{tpu_custom_call.1} parent=1 // loop_header
      %s19 = sphi 0, %s23
      %p20 = scmp.ge.s32.totalorder %s19, 4
      %s29 = sphi 0, %s31
      %s32 = sphi 0, %s29
      %s33 = sphi 0, %s32
      %s49 = sphi 0, %s33
      %s55 = sphi 0, %s57
      %s58 = sphi 0, %s55
      %s59 = sphi 0, %s58
      %s75 = sphi 0, %s59
      %s79 = sphi 0, %s79
      %s81 = sphi 0, %s79
      %s82 = sphi 0, %s81
      %s96 = sphi 0, %s82
      %s100 = sphi 0, %s100
      %s102 = sphi 0, %s100
      %s103 = sphi 0, %s102
      %s117 = sphi 0, %s103
      %s123 = sphi 0, %s125
      %s126 = sphi 0, %s123
      %s127 = sphi 0, %s126
      %s143 = sphi 0, %s127
    $region4: #{tpu_custom_call.1} parent=1 // loop_header_branch
      %22 = sbr.rel (%p20) target = $region8
    $region5: #{tpu_custom_call.1} parent=1 // loop_body
      %s24 = ssub.s32 %s19, 1
      %s25 = ssub.s32 %s19, 2
      %s26 = sadd.s32 %s19, 1
      %s27 = ssub.s32 %s19, %s26
      %p28 = scmp.eq.s32.totalorder %s27, 0
      %s30 = sadd.s32 %s29, 1
      %s31 = scalar_select %p28, %s29, %s30
      %p34 = pneg %p28
      %p35 = scmp.eq.s32.totalorder %s19, 1
      %p36 = por %p34, %p35
      %p37 = scmp.ne.s32.totalorder %s29, %s32
      %p38 = scmp.eq.s32.totalorder %s19, 0
      %p39 = por %p37, %p38
      %p40 = scmp.ne.s32.totalorder %s29, %s32
      %p41 = scmp.eq.s32.totalorder %s24, 1
      %p42 = por %p40, %p41
      %p43 = scmp.ne.s32.totalorder %s32, %s33
      %p44 = scmp.eq.s32.totalorder %s24, 0
      %p45 = por %p43, %p44
      %p46 = scmp.ne.s32.totalorder %s32, %s33
      %p47 = scmp.eq.s32.totalorder %s25, 1
      %p48 = por %p46, %p47
      %p50 = scmp.ne.s32.totalorder %s33, %s49
      %p51 = scmp.eq.s32.totalorder %s25, 0
      %p52 = por %p50, %p51
      %s53 = ssub.s32 %s19, %s26
      %p54 = scmp.eq.s32.totalorder %s53, 0
      %s56 = sadd.s32 %s55, 1
      %s57 = scalar_select %p54, %s55, %s56
      %p60 = pneg %p54
      %p61 = scmp.eq.s32.totalorder %s19, 1
      %p62 = por %p60, %p61
      %p63 = scmp.ne.s32.totalorder %s55, %s58
      %p64 = scmp.eq.s32.totalorder %s19, 0
      %p65 = por %p63, %p64
      %p66 = scmp.ne.s32.totalorder %s55, %s58
      %p67 = scmp.eq.s32.totalorder %s24, 1
      %p68 = por %p66, %p67
      %p69 = scmp.ne.s32.totalorder %s58, %s59
      %p70 = scmp.eq.s32.totalorder %s24, 0
      %p71 = por %p69, %p70
      %p72 = scmp.ne.s32.totalorder %s58, %s59
      %p73 = scmp.eq.s32.totalorder %s25, 1
      %p74 = por %p72, %p73
      %p76 = scmp.ne.s32.totalorder %s59, %s75
      %p77 = scmp.eq.s32.totalorder %s25, 0
      %p78 = por %p76, %p77
      %s80 = sadd.s32 %s79, 1
      %p83 = scmp.eq.s32.totalorder %s19, 1
      %p84 = scmp.ne.s32.totalorder %s79, %s81
      %p85 = scmp.eq.s32.totalorder %s19, 0
      %p86 = por %p84, %p85
      %p87 = scmp.ne.s32.totalorder %s79, %s81
      %p88 = scmp.eq.s32.totalorder %s24, 1
      %p89 = por %p87, %p88
      %p90 = scmp.ne.s32.totalorder %s81, %s82
      %p91 = scmp.eq.s32.totalorder %s24, 0
      %p92 = por %p90, %p91
      %p93 = scmp.ne.s32.totalorder %s81, %s82
      %p94 = scmp.eq.s32.totalorder %s25, 1
      %p95 = por %p93, %p94
      %p97 = scmp.ne.s32.totalorder %s82, %s96
      %p98 = scmp.eq.s32.totalorder %s25, 0
      %p99 = por %p97, %p98
      %s101 = sadd.s32 %s100, 1
      %p104 = scmp.eq.s32.totalorder %s19, 1
      %p105 = scmp.ne.s32.totalorder %s100, %s102
      %p106 = scmp.eq.s32.totalorder %s19, 0
      %p107 = por %p105, %p106
      %p108 = scmp.ne.s32.totalorder %s100, %s102
      %p109 = scmp.eq.s32.totalorder %s24, 1
      %p110 = por %p108, %p109
      %p111 = scmp.ne.s32.totalorder %s102, %s103
      %p112 = scmp.eq.s32.totalorder %s24, 0
      %p113 = por %p111, %p112
      %p114 = scmp.ne.s32.totalorder %s102, %s103
      %p115 = scmp.eq.s32.totalorder %s25, 1
      %p116 = por %p114, %p115
      %p118 = scmp.ne.s32.totalorder %s103, %s117
      %p119 = scmp.eq.s32.totalorder %s25, 0
      %p120 = por %p118, %p119
      %s121 = ssub.s32 %s19, %s26
      %p122 = scmp.eq.s32.totalorder %s121, 0
      %s124 = sadd.s32 %s123, 1
      %s125 = scalar_select %p122, %s123, %s124
      %p128 = pneg %p122
      %p129 = scmp.eq.s32.totalorder %s19, 1
      %p130 = por %p128, %p129
      %p131 = scmp.ne.s32.totalorder %s123, %s126
      %p132 = scmp.eq.s32.totalorder %s19, 0
      %p133 = por %p131, %p132
      %p134 = scmp.ne.s32.totalorder %s123, %s126
      %p135 = scmp.eq.s32.totalorder %s24, 1
      %p136 = por %p134, %p135
      %p137 = scmp.ne.s32.totalorder %s126, %s127
      %p138 = scmp.eq.s32.totalorder %s24, 0
      %p139 = por %p137, %p138
      %p140 = scmp.ne.s32.totalorder %s126, %s127
      %p141 = scmp.eq.s32.totalorder %s25, 1
      %p142 = por %p140, %p141
      %p144 = scmp.ne.s32.totalorder %s127, %s143
      %p145 = scmp.eq.s32.totalorder %s25, 0
      %p146 = por %p144, %p145
      %p147 = scmp.le.s32.totalorder 1, %s19
      %p148 = scmp.lt.s32.totalorder %s19, 3
      %p149 = pnand %p147, %p148
      %p150 = pneg %p149
      // Predicated region
      $region9: #{tpu_custom_call.1} parent=5 // pred_check
        _
      $region10: #{tpu_custom_call.1} parent=5 // pred_check_branch
        %152 = sbr.rel (%p149) target = $region12
      $region11: #{tpu_custom_call.1} parent=5 // pred_region
        %s153 = ssub.s32 %s19, 1
        // Predicated region
        $region13: #{tpu_custom_call.1} parent=11 // pred_check
          %p154 = pneg %p92
        $region14: #{tpu_custom_call.1} parent=11 // pred_check_branch
          %156 = sbr.rel (%p154) target = $region16
        $region15: #{tpu_custom_call.1} parent=11 // pred_region
          %158 = vsyncadd [#allocation6], 0
          %s159 = sshll.u32 %s2, 4
          %s160 = int_to_ptr.hbm [resolvable:$true] %s159
          %s161 = sshll.u32 [#allocation7], 4
          %s162 = int_to_ptr.vmem [resolvable:$true] %s161
          %167 = dma.hbm_to_vmem [thread:$0]  %s160, 2048, %s162, [#allocation6], 64, 64, 4
        $region16: #{tpu_custom_call.1} parent=11 // pred_fallthru
          _
        // Predicated region
        $region17: #{tpu_custom_call.1} parent=11 // pred_check
          %p168 = pneg %p113
        $region18: #{tpu_custom_call.1} parent=11 // pred_check_branch
          %170 = sbr.rel (%p168) target = $region20
        $region19: #{tpu_custom_call.1} parent=11 // pred_region
          _
        $region20: #{tpu_custom_call.1} parent=11 // pred_fallthru
          _
      $region12: #{tpu_custom_call.1} parent=5 // pred_fallthru
        _
      %p171 = scmp.lt.s32.totalorder %s19, 2
      // Predicated region
      $region21: #{tpu_custom_call.1} parent=5 // pred_check
        %p172 = pneg %p171
      $region22: #{tpu_custom_call.1} parent=5 // pred_check_branch
        %174 = sbr.rel (%p172) target = $region24
      $region23: #{tpu_custom_call.1} parent=5 // pred_region
        // Predicated region
        $region25: #{tpu_custom_call.1} parent=23 // pred_check
          %p175 = pneg %p39
        $region26: #{tpu_custom_call.1} parent=23 // pred_check_branch
          %177 = sbr.rel (%p175) target = $region28
        $region27: #{tpu_custom_call.1} parent=23 // pred_region
          %s178 = sand.u32 %s29, 1
          %s179 = scalar_lea.sflag [#allocation3], %s178
          %s180 = sand.u32 %s29, 1
          %s181 = smul.addr %s180, 16
          %s182 = scalar_lea.vmem [#allocation2], %s181
          %s183 = smul.u32 2, %s19
          %185 = vsyncadd %s179, 0
          %s186 = smul.addr %s183, 2
          %s187 = smul.addr %s186, 4
          %s188 = scalar_lea.hbm %s0, %s187
          %s189 = sshll.u32 %s188, 4
          %s190 = int_to_ptr.hbm [resolvable:$true] %s189
          %s191 = sshll.u32 %s182, 4
          %s192 = int_to_ptr.vmem [resolvable:$true] %s191
          %197 = dma.hbm_to_vmem [thread:$0]  %s190, 256, %s192, %s179, 128, 128, 8
        $region28: #{tpu_custom_call.1} parent=23 // pred_fallthru
          _
        // Predicated region
        $region29: #{tpu_custom_call.1} parent=23 // pred_check
          %p198 = pneg %p65
        $region30: #{tpu_custom_call.1} parent=23 // pred_check_branch
          %200 = sbr.rel (%p198) target = $region32
        $region31: #{tpu_custom_call.1} parent=23 // pred_region
          %s201 = sand.u32 %s19, 1
          %s202 = scalar_lea.sflag [#allocation6], %s201
          %s203 = sand.u32 %s55, 1
          %s204 = smul.addr %s203, 16
          %s205 = scalar_lea.vmem [#allocation5], %s204
          %s206 = smul.u32 2, %s19
          %208 = vsyncadd %s202, 0
          %s209 = smul.addr %s206, 2
          %s210 = smul.addr %s209, 4
          %s211 = scalar_lea.hbm %s1, %s210
          %s212 = sshll.u32 %s211, 4
          %s213 = int_to_ptr.hbm [resolvable:$true] %s212
          %s214 = sshll.u32 %s205, 4
          %s215 = int_to_ptr.vmem [resolvable:$true] %s214
          %220 = dma.hbm_to_vmem [thread:$0]  %s213, 256, %s215, %s202, 128, 128, 8
        $region32: #{tpu_custom_call.1} parent=23 // pred_fallthru
          _
      $region24: #{tpu_custom_call.1} parent=5 // pred_fallthru
        _
      %p221 = scmp.le.s32.totalorder 1, %s19
      %p222 = scmp.lt.s32.totalorder %s19, 3
      %p223 = pnand %p221, %p222
      %p224 = pneg %p223
      // Predicated region
      $region33: #{tpu_custom_call.1} parent=5 // pred_check
        _
      $region34: #{tpu_custom_call.1} parent=5 // pred_check_branch
        %226 = sbr.rel (%p223) target = $region36
      $region35: #{tpu_custom_call.1} parent=5 // pred_region
        %s227 = ssub.s32 %s19, 1
        %s228 = sand.u32 %s32, 1
        %s229 = scalar_lea.sflag [#allocation3], %s228
        %s230 = sand.u32 %s32, 1
        %s231 = smul.addr %s230, 16
        %s232 = scalar_lea.vmem [#allocation2], %s231
        // Predicated region
        $region37: #{tpu_custom_call.1} parent=35 // pred_check
          %p233 = pneg %p45
        $region38: #{tpu_custom_call.1} parent=35 // pred_check_branch
          %235 = sbr.rel (%p233) target = $region40
        $region39: #{tpu_custom_call.1} parent=35 // pred_region
          %237 = dma.done %s229, 256
        $region40: #{tpu_custom_call.1} parent=35 // pred_fallthru
          _
        %s238 = sand.u32 %s24, 1
        %s239 = scalar_lea.sflag [#allocation6], %s238
        %s240 = sand.u32 %s58, 1
        %s241 = smul.addr %s240, 16
        %s242 = scalar_lea.vmem [#allocation5], %s241
        // Predicated region
        $region41: #{tpu_custom_call.1} parent=35 // pred_check
          %p243 = pneg %p71
        $region42: #{tpu_custom_call.1} parent=35 // pred_check_branch
          %245 = sbr.rel (%p243) target = $region44
        $region43: #{tpu_custom_call.1} parent=35 // pred_region
          %247 = dma.done %s239, 256
        $region44: #{tpu_custom_call.1} parent=35 // pred_fallthru
          _
        // Predicated region
        $region45: #{tpu_custom_call.1} parent=35 // pred_check
          %p248 = pneg %p92
        $region46: #{tpu_custom_call.1} parent=35 // pred_check_branch
          %250 = sbr.rel (%p248) target = $region48
        $region47: #{tpu_custom_call.1} parent=35 // pred_region
          %252 = dma.done [#allocation6], 2048
        $region48: #{tpu_custom_call.1} parent=35 // pred_fallthru
          _
        %s253 = sand.u32 %s32, 1
        %s254 = scalar_lea.sflag [#allocation3], %s253
        %s255 = sand.u32 %s32, 1
        %s256 = smul.addr %s255, 16
        %s257 = scalar_lea.vmem [#allocation2], %s256
        %p258 = pneg %p45
        %p259 = pneg %p42
        %s260 = sand.u32 %s24, 1
        %s261 = scalar_lea.sflag [#allocation6], %s260
        %s262 = sand.u32 %s58, 1
        %s263 = smul.addr %s262, 16
        %s264 = scalar_lea.vmem [#allocation5], %s263
        %p265 = pneg %p71
        %p266 = pneg %p68
        %p267 = pneg %p92
        %p268 = pneg %p89
        %p269 = pneg %p113
        %p270 = pneg %p110
        %p271 = pneg %p139
        %p272 = pneg %p136
        %s273 = sand.u32 %s126, 1
        %s274 = scalar_lea.sflag [#allocation4], %s273
        %s275 = sand.u32 %s126, 1
        %s276 = smul.addr %s275, 64
        %s277 = scalar_lea.vmem [#allocation8], %s276
        %s278 = smul.u32 2, %s24
        %s279 = smul.u32 2, %s24
        %s280 = smul.u32 2, %s24
        %v281 = vld [vmem:[#allocation7] sm:$0xf]
        %v282 = vld [vmem:[#allocation7 + $0x4] sm:$0xf]
        %v283 = vld [vmem:[#allocation7 + $0x8] sm:$0xf]
        %v284 = vld [vmem:[#allocation7 + $0xc] sm:$0xf]
        %v285 = vld [vmem:[#allocation7 + $0x10] sm:$0xf]
        %v286 = vld [vmem:[#allocation7 + $0x14] sm:$0xf]
        %v287 = vld [vmem:[#allocation7 + $0x18] sm:$0xf]
        %v288 = vld [vmem:[#allocation7 + $0x1c] sm:$0xf]
        %v289 = vld [vmem:[#allocation7 + $0x20] sm:$0xf]
        %v290 = vld [vmem:[#allocation7 + $0x24] sm:$0xf]
        %v291 = vld [vmem:[#allocation7 + $0x28] sm:$0xf]
        %v292 = vld [vmem:[#allocation7 + $0x2c] sm:$0xf]
        %v293 = vld [vmem:[#allocation7 + $0x30] sm:$0xf]
        %v294 = vld [vmem:[#allocation7 + $0x34] sm:$0xf]
        %v295 = vld [vmem:[#allocation7 + $0x38] sm:$0xf]
        %v296 = vld [vmem:[#allocation7 + $0x3c] sm:$0xf]
        %v297 = vld [vmem:[#allocation7 + $0x40] sm:$0xf]
        %v298 = vld [vmem:[#allocation7 + $0x44] sm:$0xf]
        %v299 = vld [vmem:[#allocation7 + $0x48] sm:$0xf]
        %v300 = vld [vmem:[#allocation7 + $0x4c] sm:$0xf]
        %v301 = vld [vmem:[#allocation7 + $0x50] sm:$0xf]
        %v302 = vld [vmem:[#allocation7 + $0x54] sm:$0xf]
        %v303 = vld [vmem:[#allocation7 + $0x58] sm:$0xf]
        %v304 = vld [vmem:[#allocation7 + $0x5c] sm:$0xf]
        %v305 = vld [vmem:[#allocation7 + $0x60] sm:$0xf]
        %v306 = vld [vmem:[#allocation7 + $0x64] sm:$0xf]
        %v307 = vld [vmem:[#allocation7 + $0x68] sm:$0xf]
        %v308 = vld [vmem:[#allocation7 + $0x6c] sm:$0xf]
        %v309 = vld [vmem:[#allocation7 + $0x70] sm:$0xf]
        %v310 = vld [vmem:[#allocation7 + $0x74] sm:$0xf]
        %v311 = vld [vmem:[#allocation7 + $0x78] sm:$0xf]
        %v312 = vld [vmem:[#allocation7 + $0x7c] sm:$0xf]
        %v313 = vld [vmem:[%s3] sm:$0x1]
        %v314 = vld [vmem:[%s232] sm:$0xff]
        %v315 = vld [vmem:[%s232 + $0x8] sm:$0xff]
        %v317 = vperm.slane %v313, 0
        %v321 = vunpack.c.l.b16 %v314
        %v322 = vunpack.c.h.b16 %v314
        %v323 = vunpack.c.l.b16 %v315
        %v324 = vunpack.c.h.b16 %v315
        %v325 = vpack.c.b16 %v323, %v321
        %v326 = vpack.c.b16 %v324, %v322
        %v361 = vunpack.c.l.b16 %v281
        %v362 = vunpack.c.l.b16 %v282
        %v363 = vunpack.c.l.b16 %v283
        %v364 = vunpack.c.l.b16 %v284
        %v365 = vunpack.c.l.b16 %v285
        %v366 = vunpack.c.l.b16 %v286
        %v367 = vunpack.c.l.b16 %v287
        %v368 = vunpack.c.l.b16 %v288
        %v369 = vunpack.c.l.b16 %v289
        %v370 = vunpack.c.l.b16 %v290
        %v371 = vunpack.c.l.b16 %v291
        %v372 = vunpack.c.l.b16 %v292
        %v373 = vunpack.c.l.b16 %v293
        %v374 = vunpack.c.l.b16 %v294
        %v375 = vunpack.c.l.b16 %v295
        %v376 = vunpack.c.l.b16 %v296
        %v377 = vunpack.c.l.b16 %v297
        %v378 = vunpack.c.l.b16 %v298
        %v379 = vunpack.c.l.b16 %v299
        %v380 = vunpack.c.l.b16 %v300
        %v381 = vunpack.c.l.b16 %v301
        %v382 = vunpack.c.l.b16 %v302
        %v383 = vunpack.c.l.b16 %v303
        %v384 = vunpack.c.l.b16 %v304
        %v385 = vunpack.c.l.b16 %v305
        %v386 = vunpack.c.l.b16 %v306
        %v387 = vunpack.c.l.b16 %v307
        %v388 = vunpack.c.l.b16 %v308
        %v389 = vunpack.c.l.b16 %v309
        %v390 = vunpack.c.l.b16 %v310
        %v391 = vunpack.c.l.b16 %v311
        %v392 = vunpack.c.l.b16 %v312
        %v393 = vpack.c.b16 %v362, %v361
        %v394 = vpack.c.b16 %v364, %v363
        %v395 = vpack.c.b16 %v366, %v365
        %v396 = vpack.c.b16 %v368, %v367
        %v397 = vpack.c.b16 %v370, %v369
        %v398 = vpack.c.b16 %v372, %v371
        %v399 = vpack.c.b16 %v374, %v373
        %v400 = vpack.c.b16 %v376, %v375
        %v401 = vpack.c.b16 %v378, %v377
        %v402 = vpack.c.b16 %v380, %v379
        %v403 = vpack.c.b16 %v382, %v381
        %v404 = vpack.c.b16 %v384, %v383
        %v405 = vpack.c.b16 %v386, %v385
        %v406 = vpack.c.b16 %v388, %v387
        %v407 = vpack.c.b16 %v390, %v389
        %v408 = vpack.c.b16 %v392, %v391
        %425 = vmatpush.bf16.msra.mxu0 %v400
        %426 = vmatpush.bf16.msra.mxu0 %v399
        %427 = vmatpush.bf16.msra.mxu0 %v398
        %428 = vmatpush.bf16.msra.mxu0 %v397
        %429 = vmatpush.bf16.msra.mxu0 %v396
        %430 = vmatpush.bf16.msra.mxu0 %v395
        %431 = vmatpush.bf16.msra.mxu0 %v394
        %432 = vmatpush.bf16.msra.mxu0 %v393
        %433 = vmatmul.bf16.gmra.mxu0 %v325
        %v434 = vpop.f32.mrf.mxu0
        %v435 = vadd.f32 %v317, %v434
        %v436 = vpop.f32.mrf.mxu0
        %v437 = vadd.f32 %v317, %v436
        %438 = vdwg.mxu0
        %439 = vmatpush.bf16.msra.mxu0 %v408
        %440 = vmatpush.bf16.msra.mxu0 %v407
        %441 = vmatpush.bf16.msra.mxu0 %v406
        %442 = vmatpush.bf16.msra.mxu0 %v405
        %443 = vmatpush.bf16.msra.mxu0 %v404
        %444 = vmatpush.bf16.msra.mxu0 %v403
        %445 = vmatpush.bf16.msra.mxu0 %v402
        %446 = vmatpush.bf16.msra.mxu0 %v401
        %447 = vmatmul.bf16.gmra.mxu0 %v326
        %v448 = vpop.f32.mrf.mxu0
        %v449 = vadd.f32 %v435, %v448
        %v450 = vpop.f32.mrf.mxu0
        %v451 = vadd.f32 %v437, %v450
        %452 = vdwg.mxu0
        %v453 = vld [vmem:[%s242] sm:$0xff]
        %v454 = vld [vmem:[%s242 + $0x8] sm:$0xff]
        %v457 = vunpack.c.l.b16 %v453
        %v458 = vunpack.c.h.b16 %v453
        %v459 = vunpack.c.l.b16 %v454
        %v460 = vunpack.c.h.b16 %v454
        %v461 = vpack.c.b16 %v459, %v457
        %v462 = vpack.c.b16 %v460, %v458
        %465 = vmatpush.bf16.msra.mxu0 %v400
        %466 = vmatpush.bf16.msra.mxu0 %v399
        %467 = vmatpush.bf16.msra.mxu0 %v398
        %468 = vmatpush.bf16.msra.mxu0 %v397
        %469 = vmatpush.bf16.msra.mxu0 %v396
        %470 = vmatpush.bf16.msra.mxu0 %v395
        %471 = vmatpush.bf16.msra.mxu0 %v394
        %472 = vmatpush.bf16.msra.mxu0 %v393
        %473 = vmatmul.bf16.gmra.mxu0 %v461
        %v474 = vpop.f32.mrf.mxu0
        %v475 = vadd.f32 %v317, %v474
        %v476 = vpop.f32.mrf.mxu0
        %v477 = vadd.f32 %v317, %v476
        %478 = vdwg.mxu0
        %479 = vmatpush.bf16.msra.mxu0 %v408
        %480 = vmatpush.bf16.msra.mxu0 %v407
        %481 = vmatpush.bf16.msra.mxu0 %v406
        %482 = vmatpush.bf16.msra.mxu0 %v405
        %483 = vmatpush.bf16.msra.mxu0 %v404
        %484 = vmatpush.bf16.msra.mxu0 %v403
        %485 = vmatpush.bf16.msra.mxu0 %v402
        %486 = vmatpush.bf16.msra.mxu0 %v401
        %487 = vmatmul.bf16.gmra.mxu0 %v462
        %v488 = vpop.f32.mrf.mxu0
        %v489 = vadd.f32 %v475, %v488
        %v490 = vpop.f32.mrf.mxu0
        %v491 = vadd.f32 %v477, %v490
        %492 = vdwg.mxu0
        %493 = vst [vmem:[%s277] sm:$0xff] %v449
        %494 = vst [vmem:[%s277 + $0x20] sm:$0xff] %v451
        %495 = vst [vmem:[%s277 + $0x8] sm:$0xff] %v489
        %496 = vst [vmem:[%s277 + $0x28] sm:$0xff] %v491
        %v497 = vsub.f32 %v449, %v489
        %v498 = vsub.f32 %v451, %v491
        %v499 = vand.u32 2147483647, %v497
        %v500 = vand.u32 2147483647, %v498
        %501 = vst [vmem:[%s277 + $0x10] sm:$0xff] %v499
        %502 = vst [vmem:[%s277 + $0x30] sm:$0xff] %v500
        %v503 = vmul.f32 %v449, %v489
        %v504 = vmul.f32 %v451, %v491
        %505 = vst [vmem:[%s277 + $0x18] sm:$0xff] %v503
        %506 = vst [vmem:[%s277 + $0x38] sm:$0xff] %v504
        %s507 = sand.u32 %s126, 1
        %s508 = scalar_lea.sflag [#allocation4], %s507
        %s509 = sand.u32 %s126, 1
        %s510 = smul.addr %s509, 64
        %s511 = scalar_lea.vmem [#allocation8], %s510
        // Predicated region
        $region49: #{tpu_custom_call.1} parent=35 // pred_check
          %p512 = pneg %p136
        $region50: #{tpu_custom_call.1} parent=35 // pred_check_branch
          %514 = sbr.rel (%p512) target = $region52
        $region51: #{tpu_custom_call.1} parent=35 // pred_region
          %s515 = smul.u32 2, %s24
          %517 = vsyncadd %s508, 0
          %s518 = smul.addr %s515, 4
          %s519 = smul.addr %s518, 8
          %s520 = scalar_lea.hbm %s4, %s519
          %s521 = sshll.u32 %s511, 4
          %s522 = int_to_ptr.vmem [resolvable:$true] %s521
          %s523 = sshll.u32 %s520, 4
          %s524 = int_to_ptr.hbm [resolvable:$true] %s523
          %529 = dma.vmem_to_hbm [thread:$0]  %s522, 1024, %s524, %s508, 512, 512, 32
        $region52: #{tpu_custom_call.1} parent=35 // pred_fallthru
          _
      $region36: #{tpu_custom_call.1} parent=5 // pred_fallthru
        _
      %p530 = scmp.le.s32.totalorder 2, %s19
      // Predicated region
      $region53: #{tpu_custom_call.1} parent=5 // pred_check
        %p531 = pneg %p530
      $region54: #{tpu_custom_call.1} parent=5 // pred_check_branch
        %533 = sbr.rel (%p531) target = $region56
      $region55: #{tpu_custom_call.1} parent=5 // pred_region
        %s534 = ssub.s32 %s19, 2
        // Predicated region
        $region57: #{tpu_custom_call.1} parent=55 // pred_check
          %p535 = pneg %p142
        $region58: #{tpu_custom_call.1} parent=55 // pred_check_branch
          %537 = sbr.rel (%p535) target = $region60
        $region59: #{tpu_custom_call.1} parent=55 // pred_region
          %s538 = sand.u32 %s127, 1
          %s539 = scalar_lea.sflag [#allocation4], %s538
          %s540 = sand.u32 %s127, 1
          %s541 = smul.addr %s540, 64
          %s542 = scalar_lea.vmem [#allocation8], %s541
          %544 = dma.done %s539, 1024
        $region60: #{tpu_custom_call.1} parent=55 // pred_fallthru
          _
      $region56: #{tpu_custom_call.1} parent=5 // pred_fallthru
        _
    $region6: #{tpu_custom_call.1} parent=1 // loop_footer
      %s23 = sadd.s32 1, %s19
    $region7: #{tpu_custom_call.1} parent=1 // loop_footer_branch
      %18 = sbr.rel target = $region3
    $region8: #{tpu_custom_call.1} parent=1 // loop_exit
      _
    %545 = vsyncpa [#allocation3], 1
    %s546 = scalar_lea.sflag [#allocation3], 1
    %547 = vsyncpa %s546, 1
    %548 = vsyncpa [#allocation6], 1
    %s549 = scalar_lea.sflag [#allocation6], 1
    %550 = vsyncpa %s549, 1
    %551 = vsyncpa [#allocation4], 1
    %s552 = scalar_lea.sflag [#allocation4], 1
    %553 = vsyncpa %s552, 1

</llo_original>
